<compile_context>
chip_gen: v6e
topology: v6e:2x2x1
jax: 0.10.0
libtpu: 0.0.40
codegen_flags: <defaults>
</compile_context>

<pallas_src>
import functools

import jax
import jax.numpy as jnp
from jax.experimental import pallas as pl
from jax.experimental.pallas import tpu as pltpu

BN_EPS = 1e-5


def _round_up(x, m):
    return (x + m - 1) // m * m


def conv_bn_kernel(x_ref, w_ref, gb_ref, mask_ref, o_ref, stage_ref, *, n_valid):
    """Fused Conv1d (single deep matmul) + BatchNorm1d (batch stats).

    x_ref     : (C_in_p, W_in)        zero-padded, flattened (batch,length) lanes
    w_ref     : (C_out_tile, K*C_in_p) conv weight, tap-major along contraction
    gb_ref    : (C_out_tile, 2)       [:,0]=gamma, [:,1]=beta
    mask_ref  : (1, W_out)            1.0 on valid (real) output lanes
    o_ref     : (C_out_tile, W_out)   output (valid lanes extracted by wrapper)
    stage_ref : (K*C_in_p, W_out)     persistent VMEM scratch with the K shifted
                                      copies of x (built once at program_id==0)
    """
    c_in_p = x_ref.shape[0]
    n_taps = stage_ref.shape[0] // c_in_p
    w_out = o_ref.shape[1]

    # Stage the K lane-shifted copies of x once; scratch persists across the
    # (sequential) C_out-tile grid, so later tiles skip this work entirely.
    @pl.when(pl.program_id(0) == 0)
    def _stage():
        for k in range(n_taps):
            stage_ref[k * c_in_p:(k + 1) * c_in_p, :] = x_ref[:, k:k + w_out]

    # Single MXU matmul, contraction depth K*C_in_p, f32 accumulation.
    acc = jnp.dot(w_ref[...], stage_ref[...], preferred_element_type=jnp.float32)

    # BatchNorm1d training-mode statistics over valid lanes, single pass:
    # t = acc*mask (mask is 0/1) => mean = E[t], var = E[acc*t] - mean^2.
    mask = mask_ref[...]                        # (1, W_out)
    inv_n = 1.0 / n_valid
    t = acc * mask
    mean = jnp.sum(t, axis=1, keepdims=True) * inv_n
    var = jnp.sum(acc * t, axis=1, keepdims=True) * inv_n - mean * mean
    var = jnp.maximum(var, 0.0)

    # Fold BN into a single affine pass: y = acc * scale + shift.
    scale = jax.lax.rsqrt(var + BN_EPS) * gb_ref[:, 0:1]
    shift = gb_ref[:, 1:2] - mean * scale
    o_ref[...] = (acc * scale + shift).astype(o_ref.dtype)


def conv_block_1d(x, weight, gamma, beta, *, use_bf16=False):
    """x: (N, C_in, L) NCL (PyTorch layout); returns (N, C_out, L)."""
    N, C_in, L = x.shape
    C_out, _, K = weight.shape
    pad = (K - 1) // 2                      # kernel_size=5, padding=2, stride=1
    L_pad = L + 2 * pad
    NLp = N * L_pad                         # flattened (per-sample padded) lanes
    W_out = _round_up(NLp, 128)             # lane-dense output width
    # x must extend to W_out + K - 1 so every tap slice is in-bounds; cover the
    # extra with whole fake (all-zero) samples so a single jnp.pad suffices.
    n_extra = (W_out + K - 1 - NLp + L_pad - 1) // L_pad
    W_in = (N + n_extra) * L_pad

    # ---- channel padding / C_out tiling (BN is per-channel => independent) ----
    C_in_p = _round_up(C_in, 8)             # sublane-aligned staged rows
    C_out_p = _round_up(C_out, 8)
    tile_co = min(C_out_p, 128)
    C_out_p = _round_up(C_out_p, tile_co)
    n_tiles = C_out_p // tile_co

    compute_dtype = jnp.bfloat16 if use_bf16 else jnp.float32
    orig_dtype = x.dtype

    # ---- input glue: ONE pad + reshape.  Each sample gets a 2*pad zero halo on
    # its left; [2p,s0][2p,s1]... is elementwise identical to the per-sample
    # padded flattening [p][p,s0,p][p,s1,p]... so boundary taps hit zeros. ----
    xt = jnp.transpose(x, (1, 0, 2))                                   # (C_in, N, L)
    xt = jnp.pad(xt, ((0, C_in_p - C_in), (0, n_extra), (2 * pad, 0)))
    x_flat = xt.reshape(C_in_p, W_in).astype(compute_dtype)            # (C_in_p, W_in)

    # ---- weights: (C_out,C_in,K) -> (C_out_p, K*C_in_p), tap-major contraction ----
    w_p = jnp.pad(weight, ((0, C_out_p - C_out), (0, C_in_p - C_in), (0, 0)))
    w_flat = jnp.transpose(w_p, (0, 2, 1)).reshape(C_out_p, K * C_in_p)
    w_flat = w_flat.astype(compute_dtype)

    # ---- BN affine params packed into one lane-major array ----
    gb = jnp.stack([gamma.astype(jnp.float32), beta.astype(jnp.float32)], axis=1)
    gb = jnp.pad(gb, ((0, C_out_p - C_out), (0, 0)))                   # (C_out_p, 2)

    # ---- validity mask over the flattened lane axis ----
    col = jnp.arange(W_out)
    o_in_sample = col % L_pad
    mask = ((col // L_pad < N) & (o_in_sample >= pad) & (o_in_sample < pad + L))
    mask = mask.astype(jnp.float32).reshape(1, W_out)

    kernel = functools.partial(conv_bn_kernel, n_valid=float(N * L))

    out_full = pl.pallas_call(
        kernel,
        out_shape=jax.ShapeDtypeStruct((C_out_p, W_out), orig_dtype),
        grid=(n_tiles,),
        in_specs=[
            pl.BlockSpec((C_in_p, W_in), lambda i: (0, 0)),            # x: resident
            pl.BlockSpec((tile_co, K * C_in_p), lambda i: (i, 0)),     # w: per tile
            pl.BlockSpec((tile_co, 2), lambda i: (i, 0)),              # gamma/beta
            pl.BlockSpec((1, W_out), lambda i: (0, 0)),                # mask: resident
        ],
        out_specs=pl.BlockSpec((tile_co, W_out), lambda i: (i, 0)),
        scratch_shapes=[pltpu.VMEM((K * C_in_p, W_out), compute_dtype)],
        compiler_params=pltpu.CompilerParams(
            # "arbitrary": the staged scratch is built at step 0 and reused by
            # every later C_out tile, which requires sequential execution.
            dimension_semantics=("arbitrary",),
            vmem_limit_bytes=64 * 1024 * 1024),
    )(x_flat, w_flat, gb, mask)

    # ---- output glue: drop channel/lane padding, back to NCL ----
    out = out_full[:C_out, :NLp].reshape(C_out, N, L_pad)[:, :, pad:pad + L]
    return jnp.transpose(out, (1, 0, 2))                               # (N, C_out, L)


def reference(x, weight, gamma, beta):
    """Pure-JAX reference (training-mode BN with batch statistics)."""
    N, C_in, L = x.shape
    C_out, _, K = weight.shape
    pad = (K - 1) // 2
    x_pad = jnp.pad(x, ((0, 0), (0, 0), (pad, pad)))
    cols = jnp.stack([x_pad[:, :, k:k + L] for k in range(K)], 2)      # (N,C_in,K,L)
    x_cols = cols.transpose(1, 2, 0, 3).reshape(C_in * K, N * L)
    out = jnp.dot(weight.reshape(C_out, C_in * K), x_cols,
                  preferred_element_type=jnp.float32)                  # (C_out, N*L)
    mean = jnp.mean(out, axis=1, keepdims=True)
    var = jnp.mean((out - mean) ** 2, axis=1, keepdims=True)
    y = (out - mean) * jax.lax.rsqrt(var + BN_EPS)
    y = y * gamma.reshape(C_out, 1) + beta.reshape(C_out, 1)
    return y.reshape(C_out, N, L).transpose(1, 0, 2)


if __name__ == "__main__":
    # Small shapes consistent with the module: ConvBlock1d(in=4, out=8), L=16.
    N, C_IN, C_OUT, L, K = 2, 4, 8, 16, 5

    key = jax.random.PRNGKey(0)
    kx, kw = jax.random.split(key)
    x = jax.random.normal(kx, (N, C_IN, L), dtype=jnp.float32)
    # Conv1d weight: (out_channels, in_channels, kernel_size), bias=False.
    weight = jax.random.normal(kw, (C_OUT, C_IN, K), dtype=jnp.float32) * 0.1
    # BatchNorm1d default init: gamma=1, beta=0 (training mode -> batch stats).
    gamma = jnp.ones((C_OUT,), dtype=jnp.float32)
    beta = jnp.zeros((C_OUT,), dtype=jnp.float32)

    ref = reference(x, weight, gamma, beta)

    # f32 matmul path (default): tight tolerance vs f32 reference.
    f32_fn = jax.jit(functools.partial(conv_block_1d, use_bf16=False))
    out = f32_fn(x, weight, gamma, beta)
    jax.block_until_ready(out)
    assert out.shape == (N, C_OUT, L), out.shape
    assert jnp.allclose(out, ref, atol=1e-4, rtol=1e-4), (
        float(jnp.max(jnp.abs(out - ref))))

    # bf16-matmul path (MXU-native rate), f32 accumulation: loose tolerance.
    bf16_fn = jax.jit(functools.partial(conv_block_1d, use_bf16=True))
    out_bf16 = bf16_fn(x, weight, gamma, beta)
    jax.block_until_ready(out_bf16)
    assert out_bf16.shape == (N, C_OUT, L), out_bf16.shape
    assert jnp.allclose(out_bf16, ref, atol=1e-1, rtol=1e-1), (
        float(jnp.max(jnp.abs(out_bf16 - ref))))

    print("KERNEL_OK")
</pallas_src>

<mosaic_0001>
module attributes {stable_mosaic.version = 11 : i64} {
  func.func @conv_bn_kernel(%arg0: i32, %arg1: memref<8x140xf32, #tpu.memory_space<vmem>>, %arg2: memref<8x40xf32, #tpu.memory_space<vmem>>, %arg3: memref<8x2xf32, #tpu.memory_space<vmem>>, %arg4: memref<1x128xf32, #tpu.memory_space<vmem>>, %arg5: memref<8x128xf32, #tpu.memory_space<vmem>>, %arg6: memref<40x128xf32, #tpu.memory_space<vmem>>) attributes {dimension_semantics = [#tpu.dimension_semantics<arbitrary>], iteration_bounds = array<i64: 1>, scalar_prefetch = 0 : i64, scratch_operands = 1 : i64, tpu.core_type = #tpu.core_type<tc>, window_params = [{pipeline_mode = #tpu.pipeline_mode<synchronous>, transform_indices = @transform_0, window_bounds = array<i64: 8, 140>}, {transform_indices = @transform_1, window_bounds = array<i64: 8, 40>}, {transform_indices = @transform_2, window_bounds = array<i64: 8, 2>}, {pipeline_mode = #tpu.pipeline_mode<synchronous>, transform_indices = @transform_3, window_bounds = array<i64: 1, 128>}, {transform_indices = @transform_4, window_bounds = array<i64: 8, 128>}]} {
    %c0_i32 = arith.constant 0 : i32
    %0 = arith.cmpi eq, %arg0, %c0_i32 : i32
    %1 = arith.extui %0 : i1 to i32
    %c0_i32_0 = arith.constant 0 : i32
    %2 = arith.cmpi ne, %1, %c0_i32_0 : i32
    scf.if %2 {
      %c0_17 = arith.constant 0 : index
      %c0_18 = arith.constant 0 : index
      %35 = vector.load %arg1[%c0_17, %c0_18] : memref<8x140xf32, #tpu.memory_space<vmem>>, vector<8x128xf32>
      %c0_19 = arith.constant 0 : index
      %c0_20 = arith.constant 0 : index
      %36 = vector.load %arg6[%c0_19, %c0_20] : memref<40x128xf32, #tpu.memory_space<vmem>>, vector<8x128xf32>
      tpu.vector_store %arg6[%c0_19, %c0_20], %35 {strides = array<i32>} : memref<40x128xf32, #tpu.memory_space<vmem>>, vector<8x128xf32>,
      %c0_21 = arith.constant 0 : index
      %c1_22 = arith.constant 1 : index
      %37 = vector.load %arg1[%c0_21, %c1_22] : memref<8x140xf32, #tpu.memory_space<vmem>>, vector<8x128xf32>
      %c8 = arith.constant 8 : index
      %c0_23 = arith.constant 0 : index
      %38 = vector.load %arg6[%c8, %c0_23] : memref<40x128xf32, #tpu.memory_space<vmem>>, vector<8x128xf32>
      tpu.vector_store %arg6[%c8, %c0_23], %37 {strides = array<i32>} : memref<40x128xf32, #tpu.memory_space<vmem>>, vector<8x128xf32>,
      %c0_24 = arith.constant 0 : index
      %c2 = arith.constant 2 : index
      %39 = vector.load %arg1[%c0_24, %c2] : memref<8x140xf32, #tpu.memory_space<vmem>>, vector<8x128xf32>
      %c16 = arith.constant 16 : index
      %c0_25 = arith.constant 0 : index
      %40 = vector.load %arg6[%c16, %c0_25] : memref<40x128xf32, #tpu.memory_space<vmem>>, vector<8x128xf32>
      tpu.vector_store %arg6[%c16, %c0_25], %39 {strides = array<i32>} : memref<40x128xf32, #tpu.memory_space<vmem>>, vector<8x128xf32>,
      %c0_26 = arith.constant 0 : index
      %c3 = arith.constant 3 : index
      %41 = vector.load %arg1[%c0_26, %c3] : memref<8x140xf32, #tpu.memory_space<vmem>>, vector<8x128xf32>
      %c24 = arith.constant 24 : index
      %c0_27 = arith.constant 0 : index
      %42 = vector.load %arg6[%c24, %c0_27] : memref<40x128xf32, #tpu.memory_space<vmem>>, vector<8x128xf32>
      tpu.vector_store %arg6[%c24, %c0_27], %41 {strides = array<i32>} : memref<40x128xf32, #tpu.memory_space<vmem>>, vector<8x128xf32>,
      %c0_28 = arith.constant 0 : index
      %c4 = arith.constant 4 : index
      %43 = vector.load %arg1[%c0_28, %c4] : memref<8x140xf32, #tpu.memory_space<vmem>>, vector<8x128xf32>
      %c32 = arith.constant 32 : index
      %c0_29 = arith.constant 0 : index
      %44 = vector.load %arg6[%c32, %c0_29] : memref<40x128xf32, #tpu.memory_space<vmem>>, vector<8x128xf32>
      tpu.vector_store %arg6[%c32, %c0_29], %43 {strides = array<i32>} : memref<40x128xf32, #tpu.memory_space<vmem>>, vector<8x128xf32>,
    } else {
    }
    %c0 = arith.constant 0 : index
    %c0_1 = arith.constant 0 : index
    %3 = vector.load %arg2[%c0, %c0_1] : memref<8x40xf32, #tpu.memory_space<vmem>>, vector<8x40xf32>
    %c0_2 = arith.constant 0 : index
    %c0_3 = arith.constant 0 : index
    %4 = vector.load %arg6[%c0_2, %c0_3] : memref<40x128xf32, #tpu.memory_space<vmem>>, vector<40x128xf32>
    %cst = arith.constant dense<0.000000e+00> : vector<8x128xf32>
    %5 = tpu.matmul %3, %4, %cst {dimension_numbers = #tpu.dot_dimension_numbers<[1], [0], [0], [1], [0, 0, 1, 1], [], []>} : vector<8x40xf32>, vector<40x128xf32>, vector<8x128xf32> -> vector<8x128xf32>
    %c0_4 = arith.constant 0 : index
    %c0_5 = arith.constant 0 : index
    %6 = vector.load %arg4[%c0_4, %c0_5] : memref<1x128xf32, #tpu.memory_space<vmem>>, vector<1x128xf32>
    %7 = vector.broadcast %6 : vector<1x128xf32> to vector<8x128xf32>
    %8 = arith.mulf %5, %7 : vector<8x128xf32>
    %cst_6 = arith.constant dense<0.000000e+00> : vector<8xf32>
    %9 = vector.multi_reduction <add>, %8, %cst_6 [1] : vector<8x128xf32> to vector<8xf32>
    %10 = vector.shape_cast %9 : vector<8xf32> to vector<8x1xf32>
    %cst_7 = arith.constant 3.125000e-02 : f32
    %11 = vector.broadcast %cst_7 : f32 to vector<8x1xf32>
    %12 = arith.mulf %10, %11 : vector<8x1xf32>
    %13 = arith.mulf %5, %8 : vector<8x128xf32>
    %cst_8 = arith.constant dense<0.000000e+00> : vector<8xf32>
    %14 = vector.multi_reduction <add>, %13, %cst_8 [1] : vector<8x128xf32> to vector<8xf32>
    %15 = vector.shape_cast %14 : vector<8xf32> to vector<8x1xf32>
    %cst_9 = arith.constant 3.125000e-02 : f32
    %16 = vector.broadcast %cst_9 : f32 to vector<8x1xf32>
    %17 = arith.mulf %15, %16 : vector<8x1xf32>
    %18 = arith.mulf %12, %12 : vector<8x1xf32>
    %19 = arith.subf %17, %18 : vector<8x1xf32>
    %cst_10 = arith.constant 0.000000e+00 : f32
    %20 = vector.broadcast %cst_10 : f32 to vector<8x1xf32>
    %21 = arith.maximumf %19, %20 : vector<8x1xf32>
    %cst_11 = arith.constant 9.99999974E-6 : f32
    %22 = vector.broadcast %cst_11 : f32 to vector<8x1xf32>
    %23 = arith.addf %21, %22 : vector<8x1xf32>
    %24 = math.rsqrt %23 : vector<8x1xf32>
    %c0_12 = arith.constant 0 : index
    %c0_13 = arith.constant 0 : index
    %25 = vector.load %arg3[%c0_12, %c0_13] : memref<8x2xf32, #tpu.memory_space<vmem>>, vector<8x1xf32>
    %26 = arith.mulf %24, %25 : vector<8x1xf32>
    %c0_14 = arith.constant 0 : index
    %c1 = arith.constant 1 : index
    %27 = vector.load %arg3[%c0_14, %c1] : memref<8x2xf32, #tpu.memory_space<vmem>>, vector<8x1xf32>
    %28 = arith.mulf %12, %26 : vector<8x1xf32>
    %29 = arith.subf %27, %28 : vector<8x1xf32>
    %30 = vector.broadcast %26 : vector<8x1xf32> to vector<8x128xf32>
    %31 = arith.mulf %5, %30 : vector<8x128xf32>
    %32 = vector.broadcast %29 : vector<8x1xf32> to vector<8x128xf32>
    %33 = arith.addf %31, %32 : vector<8x128xf32>
    %c0_15 = arith.constant 0 : index
    %c0_16 = arith.constant 0 : index
    %34 = vector.load %arg5[%c0_15, %c0_16] : memref<8x128xf32, #tpu.memory_space<vmem>>, vector<8x128xf32>
    tpu.vector_store %arg5[%c0_15, %c0_16], %33 {strides = array<i32>} : memref<8x128xf32, #tpu.memory_space<vmem>>, vector<8x128xf32>,
    return
  }
  func.func @transform_0(%arg0: i32) -> (i32, i32) {
    %c0_i32 = arith.constant 0 : i32
    %c0_i32_0 = arith.constant 0 : i32
    %c0_i32_1 = arith.constant 0 : i32
    return %c0_i32, %c0_i32_0 : i32, i32
  }
  func.func @transform_1(%arg0: i32) -> (i32, i32) {
    %c0_i32 = arith.constant 0 : i32
    %c0_i32_0 = arith.constant 0 : i32
    return %arg0, %c0_i32 : i32, i32
  }
  func.func @transform_2(%arg0: i32) -> (i32, i32) {
    %c0_i32 = arith.constant 0 : i32
    %c0_i32_0 = arith.constant 0 : i32
    return %arg0, %c0_i32 : i32, i32
  }
  func.func @transform_3(%arg0: i32) -> (i32, i32) {
    %c0_i32 = arith.constant 0 : i32
    %c0_i32_0 = arith.constant 0 : i32
    %c0_i32_1 = arith.constant 0 : i32
    return %c0_i32, %c0_i32_0 : i32, i32
  }
  func.func @transform_4(%arg0: i32) -> (i32, i32) {
    %c0_i32 = arith.constant 0 : i32
    %c0_i32_0 = arith.constant 0 : i32
    return %arg0, %c0_i32 : i32, i32
  }
}

</mosaic_0001>

<llo_original>
// kernel: conv_block_1d.1
$region0: #{conv_block_1d.1}
  #allocation0 [shape = 'u32[]', space=smem, size = 0x4, offset = 0x4, fixed_abs, tag = 'smem constant byte address 0x4 - core index']
  #allocation1 [shape = 'u32[144,128]{1,0:T(1,128)}', space=vmem, size = 0x12000, scoped, tag = 'internal scratch']
  #allocation2 [shape = 'f32[40,128]{1,0:T(8,128)}', space=vmem, size = 0x5000, scoped, tag = 'scratch operand']
  %s0 = inlined_call_operand.vmem [shape: f32[8,140], index: 0, kind: input, shape index: {}]
  %s1 = inlined_call_operand.vmem [shape: f32[8,40], index: 1, kind: input, shape index: {}]
  %s2 = inlined_call_operand.vmem [shape: f32[8,2], index: 2, kind: input, shape index: {}]
  %s3 = inlined_call_operand.vmem [shape: f32[1,128], index: 3, kind: input, shape index: {}]
  %s4 = inlined_call_operand.vmem [shape: f32[8,128], index: 4, kind: output, shape index: {}]
  %s5 = sld [smem:[#allocation0]]
  $region30: #{conv_block_1d.1} parent=0
    _
  %s7 = ssub.s32 1, %s5
  %s8 = scalar_select 0, %s7, %s5
  // Predicated region
  $region2: #{conv_block_1d.1} parent=0 // pred_check
    _
  $region3: #{conv_block_1d.1} parent=0 // pred_check_branch
    %10 = sbr.rel (0) target = $region5
  $region4: #{conv_block_1d.1} parent=0 // pred_region
    _
  $region5: #{conv_block_1d.1} parent=0 // pred_fallthru
    _
  // Predicated region
  $region6: #{conv_block_1d.1} parent=0 // pred_check
    _
  $region7: #{conv_block_1d.1} parent=0 // pred_check_branch
    %12 = sbr.rel (0) target = $region9
  $region8: #{conv_block_1d.1} parent=0 // pred_region
    _
  $region9: #{conv_block_1d.1} parent=0 // pred_fallthru
    _
  // Predicated region
  $region10: #{conv_block_1d.1} parent=0 // pred_check
    _
  $region11: #{conv_block_1d.1} parent=0 // pred_check_branch
    %14 = sbr.rel (0) target = $region13
  $region12: #{conv_block_1d.1} parent=0 // pred_region
    _
  $region13: #{conv_block_1d.1} parent=0 // pred_fallthru
    _
  // Predicated region
  $region14: #{conv_block_1d.1} parent=0 // pred_check
    _
  $region15: #{conv_block_1d.1} parent=0 // pred_check_branch
    %16 = sbr.rel (0) target = $region17
  $region16: #{conv_block_1d.1} parent=0 // pred_region
    _
  $region17: #{conv_block_1d.1} parent=0 // pred_fallthru
    _
  %p17 = scmp.eq.s32.totalorder 0, 0
  // Predicated region
  $region18: #{conv_block_1d.1} parent=0 // pred_check
    %p18 = pneg %p17
  $region19: #{conv_block_1d.1} parent=0 // pred_check_branch
    %20 = sbr.rel (%p18) target = $region21
  $region20: #{conv_block_1d.1} parent=0 // pred_region
    %v21 = vld [vmem:[%s0] sm:$0xff]
    %22 = vst [vmem:[#allocation2] sm:$0xff] %v21
    %v23 = vld [vmem:[%s0] sm:$0xff]
    %v24 = vld [vmem:[%s0 + $0x8] sm:$0xff]
    %27 = vrot.lane.b32.xlu0 %v23, 127
    %v28 = vpop.permute.xlu0 %27
    %29 = vrot.lane.b32.xlu0 %v24, 127
    %v30 = vpop.permute.xlu0 %29
    %vm31 = vcmask 1039360
    %v32 = vsel %vm31, %v28, %v30
    %34 = vst [vmem:[#allocation2 + $0x8] sm:$0xff] %v32
    %v35 = vld [vmem:[%s0] sm:$0xff]
    %v36 = vld [vmem:[%s0 + $0x8] sm:$0xff]
    %39 = vrot.lane.b32.xlu0 %v35, 126
    %v40 = vpop.permute.xlu0 %39
    %41 = vrot.lane.b32.xlu0 %v36, 126
    %v42 = vpop.permute.xlu0 %41
    %vm43 = vcmask 1031168
    %v44 = vsel %vm43, %v40, %v42
    %46 = vst [vmem:[#allocation2 + $0x10] sm:$0xff] %v44
    %v47 = vld [vmem:[%s0] sm:$0xff]
    %v48 = vld [vmem:[%s0 + $0x8] sm:$0xff]
    %51 = vrot.lane.b32.xlu0 %v47, 125
    %v52 = vpop.permute.xlu0 %51
    %53 = vrot.lane.b32.xlu0 %v48, 125
    %v54 = vpop.permute.xlu0 %53
    %vm55 = vcmask 1022976
    %v56 = vsel %vm55, %v52, %v54
    %58 = vst [vmem:[#allocation2 + $0x18] sm:$0xff] %v56
    %v59 = vld [vmem:[%s0] sm:$0xff]
    %v60 = vld [vmem:[%s0 + $0x8] sm:$0xff]
    %63 = vrot.lane.b32.xlu0 %v59, 124
    %v64 = vpop.permute.xlu0 %63
    %65 = vrot.lane.b32.xlu0 %v60, 124
    %v66 = vpop.permute.xlu0 %65
    %vm67 = vcmask 1014784
    %v68 = vsel %vm67, %v64, %v66
    %70 = vst [vmem:[#allocation2 + $0x20] sm:$0xff] %v68
  $region21: #{conv_block_1d.1} parent=0 // pred_fallthru
    _
  %v71 = vld [vmem:[%s1] sm:$0xff]
  %v72 = vld [vmem:[#allocation2] sm:$0xff]
  %v73 = vld [vmem:[#allocation2 + $0x8] sm:$0xff]
  %v74 = vld [vmem:[#allocation2 + $0x10] sm:$0xff]
  %v75 = vld [vmem:[#allocation2 + $0x18] sm:$0xff]
  %v76 = vld [vmem:[#allocation2 + $0x20] sm:$0xff]
  %vm77 = vcmask 326656
  %v79 = vsel %vm77, %v71, 0
  %81 = vmatprep.subr.mxu0 0.0
  %82 = vmatpush1.msra.mxu0 0.0
  %83 = vmatprep.subr.mxu0 0.0
  %84 = vmatpush1.msra.mxu0 0.0
  %85 = vmatprep.subr.mxu0 0.0
  %86 = vmatpush1.msra.mxu0 0.0
  %87 = vmatprep.subr.mxu0 0.0
  %88 = vmatpush1.msra.mxu0 0.0
  %89 = vmatprep.subr.mxu0 0.0
  %90 = vmatpush1.msra.mxu0 0.0
  %91 = vmatprep.subr.mxu0 0.0
  %92 = vmatpush1.msra.mxu0 0.0
  %93 = vmatprep.subr.mxu0 0.0
  %94 = vmatpush1.msra.mxu0 0.0
  %95 = vmatprep.subr.mxu0 0.0
  %96 = vmatpush1.msra.mxu0 0.0
  %97 = vmatprep.subr.mxu0 0.0
  %98 = vmatpush1.msra.mxu0 0.0
  %99 = vmatprep.subr.mxu0 0.0
  %100 = vmatpush1.msra.mxu0 0.0
  %101 = vmatprep.subr.mxu0 0.0
  %102 = vmatpush1.msra.mxu0 0.0
  %103 = vmatprep.subr.mxu0 0.0
  %104 = vmatpush1.msra.mxu0 %v76
  %105 = vmatprep.subr.mxu0 0.0
  %106 = vmatpush1.msra.mxu0 %v75
  %107 = vmatprep.subr.mxu0 0.0
  %108 = vmatpush1.msra.mxu0 %v74
  %109 = vmatprep.subr.mxu0 0.0
  %110 = vmatpush1.msra.mxu0 %v73
  %111 = vmatprep.subr.mxu0 0.0
  %112 = vmatpush1.msra.mxu0 %v72
  %113 = vmatprep.subr.mxu0 0.0
  %114 = vmatpush2.msra.mxu0 0.0
  %115 = vmatprep.subr.mxu0 0.0
  %116 = vmatpush2.msra.mxu0 0.0
  %117 = vmatprep.subr.mxu0 0.0
  %118 = vmatpush2.msra.mxu0 0.0
  %119 = vmatprep.subr.mxu0 0.0
  %120 = vmatpush2.msra.mxu0 0.0
  %121 = vmatprep.subr.mxu0 0.0
  %122 = vmatpush2.msra.mxu0 0.0
  %123 = vmatprep.subr.mxu0 0.0
  %124 = vmatpush2.msra.mxu0 0.0
  %125 = vmatprep.subr.mxu0 0.0
  %126 = vmatpush2.msra.mxu0 0.0
  %127 = vmatprep.subr.mxu0 0.0
  %128 = vmatpush2.msra.mxu0 0.0
  %129 = vmatprep.subr.mxu0 0.0
  %130 = vmatpush2.msra.mxu0 0.0
  %131 = vmatprep.subr.mxu0 0.0
  %132 = vmatpush2.msra.mxu0 0.0
  %133 = vmatprep.subr.mxu0 0.0
  %134 = vmatpush2.msra.mxu0 0.0
  %135 = vmatprep.subr.mxu0 0.0
  %136 = vmatpush2.msra.mxu0 0.0
  %137 = vmatprep.subr.mxu0 0.0
  %138 = vmatpush2.msra.mxu0 0.0
  %139 = vmatprep.subr.mxu0 0.0
  %140 = vmatpush2.msra.mxu0 0.0
  %141 = vmatprep.subr.mxu0 0.0
  %142 = vmatpush2.msra.mxu0 0.0
  %143 = vmatprep.subr.mxu0 0.0
  %144 = vmatpush2.msra.mxu0 0.0
  %145 = vmatprep.mubr.f32.mxu0 0.0
  %146 = vmatmul.mubr.f32.gmra.mxu0 %v79
  %v147 = vpop.f32.mrf.mxu0
  %v148 = vadd.f32 0.0, %v147
  %v149 = vpop.f32.mrf.mxu0
  %150 = vdwg.mxu0
  %v151 = vld [vmem:[%s3] sm:$0x1]
  %v153 = vlaneseq
  %v154 = vshrl.u32 %v153, 7
  %v155 = vsub.s32 0, %v154
  %v156 = vrot.slane %v151, %v155
  %v158 = vmul.f32 %v148, %v156
  %159 = vadd.xlane.f32.xlu0 %v158
  %v160 = vpop.xlane.xlu0 %159
  %v161 = vmul.f32 %v160, 0.03125
  %v162 = vmul.f32 %v148, %v158
  %163 = vadd.xlane.f32.xlu0 %v162
  %v164 = vpop.xlane.xlu0 %163
  %v165 = vmul.f32 %v164, 0.03125
  %v166 = vmul.f32 %v161, %v161
  %v167 = vsub.f32 %v165, %v166
  %v168 = vmax.f32 %v167, 0.0
  %v169 = vadd.f32 %v168, 1e-05
  %v170 = vrsqrt.pop %v169
  %v171 = vld [vmem:[%s2] sm:$0xff]
  %v172 = vmul.f32 %v170, %v171
  %v173 = vmul.f32 %v161, %v172
  %175 = vrot.lane.b32.xlu0 %v173, 1
  %v176 = vpop.permute.xlu0 %175
  %v178 = vsub.f32 %v171, %v176
  %180 = vset.pattern.permute.xlu0 0
  %181 = vperm.xlu0 %180, %v172
  %v182 = vpop.permute.xlu0 %181
  %v184 = vmul.f32 %v148, %v182
  %186 = vset.pattern.permute.xlu0 1
  %187 = vperm.xlu0 %186, %v178
  %v188 = vpop.permute.xlu0 %187
  %v190 = vadd.f32 %v184, %v188
  %191 = vst [vmem:[%s4] sm:$0xff] %v190
  // Predicated region
  $region22: #{conv_block_1d.1} parent=0 // pred_check
    _
  $region23: #{conv_block_1d.1} parent=0 // pred_check_branch
    %193 = sbr.rel (0) target = $region25
  $region24: #{conv_block_1d.1} parent=0 // pred_region
    _
  $region25: #{conv_block_1d.1} parent=0 // pred_fallthru
    _
  // Predicated region
  $region26: #{conv_block_1d.1} parent=0 // pred_check
    _
  $region27: #{conv_block_1d.1} parent=0 // pred_check_branch
    %195 = sbr.rel (0) target = $region29
  $region28: #{conv_block_1d.1} parent=0 // pred_region
    _
  $region29: #{conv_block_1d.1} parent=0 // pred_fallthru
    _

</llo_original>
